<compile_context>
chip_gen: v7x
topology: tpu7x:2x2x1
jax: 0.10.0
libtpu: 0.0.40
codegen_flags: <defaults>
</compile_context>

<pallas_src>
import jax
import jax.numpy as jnp
from jax.experimental import pallas as pl
from jax.experimental.pallas import tpu as pltpu


# ----------------------------------------------------------------------------
# Fused kernel: the whole TwoInputSequential chain for one (sample, HW-slab).
#   For each layer l:  x <- relu( scale_l[domain] * (W_l^T @ x) + shift_l[domain] )
# ----------------------------------------------------------------------------
def _fused_chain_kernel(labels_ref, x_ref, params_ref, *refs):
    # refs = [w_0, w_1, ..., w_{L-1}, o_ref]
    del labels_ref                       # labels are consumed by the index_maps
    o_ref = refs[-1]
    w_refs = refs[:-1]

    x = x_ref[0]                         # (C0, T_HW) bf16, lane axis = HW slab
    params = params_ref[0]               # (2L, Cmax) f32, label-selected scale/shift rows

    for l, w_ref in enumerate(w_refs):   # static unroll over layers (weights resident in VMEM)
        w = w_ref[...]                   # (Cout_l, Cin_l) bf16, label-independent
        cout_l = w.shape[0]
        # MXU matmul, f32 accumulate; (C, HW) layout keeps HW on the lane axis.
        y = jnp.dot(w, x, preferred_element_type=jnp.float32)       # (Cout_l, T_HW) f32
        # Domain-conditional BN applied in the tail (VPU FMA; scale NOT folded into w).
        # Lane-dense (1, Cout) rows -> sublane (Cout, 1) columns: one small XLU transpose.
        scale = params[2 * l:2 * l + 1, :cout_l].T                  # (Cout_l, 1) f32
        shift = params[2 * l + 1:2 * l + 2, :cout_l].T              # (Cout_l, 1) f32
        y = jnp.maximum(y * scale + shift, 0.0)                     # BN + ReLU (f32 VPU)
        x = y.astype(jnp.bfloat16)       # feed next layer's matmul in bf16
    o_ref[0] = x                         # single lane-dense bf16 store of the final slab


# ----------------------------------------------------------------------------
# TwoInputSequential: container forward with two inputs (one fused pallas_call)
# ----------------------------------------------------------------------------
def two_input_sequential(layer_params_list, x_nchw, labels, *, tile_hw=512):
    """forward(input1, input2): for module in modules: input1, input2 = module(input1, input2)."""
    if not layer_params_list:
        return x_nchw, labels
    assert tile_hw % 128 == 0, "HW tile must be lane-dense (multiple of 128)"

    n, c, h, w = x_nchw.shape
    hw = h * w
    # Lane-dense tile: at most tile_hw, at least the 128-rounded spatial extent.
    hw_128 = ((hw + 127) // 128) * 128
    t_hw = min(tile_hw, hw_128)
    hw_pad = ((hw + t_hw - 1) // t_hw) * t_hw
    num_hw_tiles = hw_pad // t_hw

    # NCHW flattened is already channels-on-sublane / spatial-on-lane: (N, C, HW).
    x = x_nchw.reshape(n, c, hw).astype(jnp.bfloat16)
    if hw_pad != hw:
        # Pad HW to a tile multiple so every store is an unmasked full-width vst.
        x = jnp.pad(x, ((0, 0), (0, 0), (0, hw_pad - hw)))

    eps = 1e-5
    num_layers = len(layer_params_list)
    couts = [p["w"].shape[1] for p in layer_params_list]
    cins = [p["w"].shape[0] for p in layer_params_list]
    cmax = max(couts)
    num_domains = layer_params_list[0]["gamma"].shape[0]
    cout_last = couts[-1]

    # Eval-mode BN folding (glue, not hot path):
    #   scale = gamma / sqrt(var + eps); shift = beta - mean * scale
    # Packed lane-dense as ONE (D, 2L, Cmax) f32 array, selected per sample by label.
    params = jnp.zeros((num_domains, 2 * num_layers, cmax), jnp.float32)
    weights = []
    for l, p in enumerate(layer_params_list):
        scale = p["gamma"] / jnp.sqrt(p["var"] + eps)               # (D, Cout_l)
        shift = p["beta"] - p["mean"] * scale                       # (D, Cout_l)
        params = params.at[:, 2 * l, :couts[l]].set(scale)
        params = params.at[:, 2 * l + 1, :couts[l]].set(shift)
        weights.append(p["w"].T.astype(jnp.bfloat16))               # (Cout_l, Cin_l), NOT scaled

    # TODO(synk): labels are assumed to lie in [0, num_domains); out-of-range labels
    # would drive the params index_map out of bounds (only the DMA bounds check catches it).

    in_specs = [
        # Current sample's HW slab (inner grid axis = HW so weights are revisited).
        pl.BlockSpec((1, c, t_hw), lambda i, j, lbl: (i, 0, j)),
        # Per-sample domain-selected scale/shift rows (tiny, lane-dense).
        pl.BlockSpec((1, 2 * num_layers, cmax), lambda i, j, lbl: (lbl[i], 0, 0)),
    ]
    for wt in weights:
        co, ci = wt.shape
        # Label-independent, constant block index -> VMEM-resident across the whole grid.
        in_specs.append(pl.BlockSpec((co, ci), lambda i, j, lbl: (0, 0)))

    # Advisory cost estimate for XLA scheduling around the custom call.
    flops = 2 * n * hw_pad * sum(co * ci for co, ci in zip(couts, cins))
    bytes_accessed = (
        x.size * 2                                                  # bf16 activations in
        + sum(wt.size for wt in weights) * 2                        # bf16 weights
        + params.size * 4                                           # f32 scale/shift
        + n * cout_last * hw_pad * 2                                # bf16 output
    )
    cost = pl.CostEstimate(flops=flops, transcendentals=0, bytes_accessed=bytes_accessed)

    # VMEM budget (double-buffered IO + resident weights + intermediates), with margin.
    vmem_need = (
        2 * c * t_hw * 2
        + 2 * cout_last * t_hw * 2
        + sum(2 * wt.size * 2 for wt in weights)
        + 2 * params.shape[1] * params.shape[2] * 4
        + max(co for co in couts) * t_hw * 6
    )
    vmem_limit = min(64 << 20, max(32 << 20, 2 * vmem_need + (2 << 20)))

    out = pl.pallas_call(
        _fused_chain_kernel,
        out_shape=jax.ShapeDtypeStruct((n, cout_last, hw_pad), jnp.bfloat16),
        grid_spec=pltpu.PrefetchScalarGridSpec(
            num_scalar_prefetch=1,             # labels land in SMEM, feed the index_maps
            grid=(n, num_hw_tiles),            # HW inner so weight blocks are never re-fetched
            in_specs=in_specs,
            out_specs=pl.BlockSpec((1, cout_last, t_hw), lambda i, j, lbl: (i, 0, j)),
        ),
        compiler_params=pltpu.CompilerParams(
            # Each (sample, HW-slab) is independent -> both axes parallel (v7x 2-TC sharding).
            dimension_semantics=("parallel", "parallel"),
            vmem_limit_bytes=vmem_limit,
        ),
        cost_estimate=cost,
    )(labels, x, params, *weights)

    # Strip HW padding, back to NCHW (pure reshape).  Output stays bf16 (next consumer
    # takes bf16 anyway; avoids re-reading the largest HBM stream just to upcast).
    out = out[:, :, :hw].reshape(n, cout_last, h, w)
    return out, labels


# ----------------------------------------------------------------------------
# References for correctness
# ----------------------------------------------------------------------------
def reference_bf16(layer_params_list, x_nchw, labels):
    """Mirrors the kernel numerics (bf16 matmul, f32 tail BN/ReLU, bf16 output)."""
    n, c, h, w = x_nchw.shape
    x = x_nchw.reshape(n, c, h * w).astype(jnp.bfloat16)
    eps = 1e-5
    for p in layer_params_list:
        wt = p["w"].T.astype(jnp.bfloat16)                           # (Cout, Cin)
        scale = p["gamma"] / jnp.sqrt(p["var"] + eps)                # (D, Cout)
        shift = p["beta"] - p["mean"] * scale
        y = jnp.einsum("dc,ncs->nds", wt, x, preferred_element_type=jnp.float32)
        y = jnp.maximum(y * scale[labels][:, :, None] + shift[labels][:, :, None], 0.0)
        x = y.astype(jnp.bfloat16)
    cout = x.shape[1]
    return x.reshape(n, cout, h, w), labels


def reference_f32(layer_params_list, x_nchw, labels):
    """Full-precision reference of the original module semantics."""
    n, c, h, w = x_nchw.shape
    x = jnp.transpose(x_nchw, (0, 2, 3, 1)).reshape(n, h * w, c)
    eps = 1e-5
    for p in layer_params_list:
        y = jnp.einsum("nsc,cd->nsd", x, p["w"])
        scale = p["gamma"] / jnp.sqrt(p["var"] + eps)
        shift = p["beta"] - p["mean"] * scale
        y = y * scale[labels][:, None, :] + shift[labels][:, None, :]
        x = jnp.maximum(y, 0.0)
    cout = x.shape[-1]
    return jnp.transpose(x.reshape(n, h, w, cout), (0, 3, 1, 2)), labels


# ----------------------------------------------------------------------------
# Deterministic parameter construction
# ----------------------------------------------------------------------------
def make_layer_params(key, cin, cout, num_domains):
    k1, k2, k3, k4 = jax.random.split(key, 4)
    return {
        "w": jax.random.normal(k1, (cin, cout), jnp.float32) * 0.1,   # 1x1 conv weight
        "gamma": 1.0 + 0.1 * jax.random.normal(k2, (num_domains, cout), jnp.float32),
        "beta": 0.1 * jax.random.normal(k3, (num_domains, cout), jnp.float32),
        "mean": 0.05 * jax.random.normal(k4, (num_domains, cout), jnp.float32),
        "var": jnp.ones((num_domains, cout), jnp.float32),
    }


if __name__ == "__main__":
    key = jax.random.PRNGKey(0)
    kx, kp1, kp2 = jax.random.split(key, 3)

    # Small shapes consistent with the module's use in resnetABN.
    N, C, H, W = 2, 8, 16, 16          # HW = 256 (lane-dense, exercises 2 HW tiles at t_hw=128)
    NUM_DOMAINS = 3

    x = jax.random.normal(kx, (N, C, H, W), jnp.float32)   # input1 (NCHW, PyTorch convention)
    labels = jnp.array([0, 2], dtype=jnp.int32)             # input2 (per-sample domain label)
    assert int(labels.max()) < NUM_DOMAINS and int(labels.min()) >= 0

    # A TwoInputSequential of two (conv1x1 + conditional-BN + ReLU) two-input modules.
    layers = [
        make_layer_params(kp1, C, C, NUM_DOMAINS),
        make_layer_params(kp2, C, C, NUM_DOMAINS),
    ]

    out, out_labels = two_input_sequential(layers, x, labels, tile_hw=128)
    out = jax.block_until_ready(out)
    out_labels = jax.block_until_ready(out_labels)

    # Exact-numerics reference (bf16 matmul path, like the kernel).
    ref_out, ref_labels = reference_bf16(layers, x, labels)
    assert out.shape == (N, C, H, W)
    assert jnp.allclose(out.astype(jnp.float32), ref_out.astype(jnp.float32),
                        atol=1e-2, rtol=1e-2)
    assert jnp.array_equal(out_labels, ref_labels)

    # Loose sanity check against the full-precision original semantics.
    ref32_out, _ = reference_f32(layers, x, labels)
    assert jnp.allclose(out.astype(jnp.float32), ref32_out, atol=5e-2, rtol=5e-2)

    print("KERNEL_OK")
</pallas_src>

<mosaic_0001>
module attributes {stable_mosaic.version = 11 : i64} {
  func.func @_fused_chain_kernel(%arg0: i32, %arg1: i32, %arg2: memref<2xi32, #tpu.memory_space<smem>>, %arg3: memref<1x8x128xbf16, #tpu.memory_space<vmem>>, %arg4: memref<1x4x8xf32, #tpu.memory_space<vmem>>, %arg5: memref<8x8xbf16, #tpu.memory_space<vmem>>, %arg6: memref<8x8xbf16, #tpu.memory_space<vmem>>, %arg7: memref<1x8x128xbf16, #tpu.memory_space<vmem>>) attributes {dimension_semantics = [#tpu.dimension_semantics<parallel>, #tpu.dimension_semantics<parallel>], iteration_bounds = array<i64: 2, 2>, scalar_prefetch = 1 : i64, scratch_operands = 0 : i64, tpu.core_type = #tpu.core_type<tc>, window_params = [{transform_indices = @transform_0, window_bounds = array<i64: 1, 8, 128>}, {transform_indices = @transform_1, window_bounds = array<i64: 1, 4, 8>}, {pipeline_mode = #tpu.pipeline_mode<synchronous>, transform_indices = @transform_2, window_bounds = array<i64: 8, 8>}, {pipeline_mode = #tpu.pipeline_mode<synchronous>, transform_indices = @transform_3, window_bounds = array<i64: 8, 8>}, {transform_indices = @transform_4, window_bounds = array<i64: 1, 8, 128>}]} {
    %c0 = arith.constant 0 : index
    %c0_0 = arith.constant 0 : index
    %c0_1 = arith.constant 0 : index
    %0 = vector.load %arg3[%c0, %c0_0, %c0_1] : memref<1x8x128xbf16, #tpu.memory_space<vmem>>, vector<1x8x128xbf16>
    %1 = vector.shape_cast %0 : vector<1x8x128xbf16> to vector<8x128xbf16>
    %c0_2 = arith.constant 0 : index
    %c0_3 = arith.constant 0 : index
    %c0_4 = arith.constant 0 : index
    %2 = vector.load %arg4[%c0_2, %c0_3, %c0_4] : memref<1x4x8xf32, #tpu.memory_space<vmem>>, vector<1x4x8xf32>
    %3 = vector.shape_cast %2 : vector<1x4x8xf32> to vector<4x8xf32>
    %c0_5 = arith.constant 0 : index
    %c0_6 = arith.constant 0 : index
    %4 = vector.load %arg5[%c0_5, %c0_6] : memref<8x8xbf16, #tpu.memory_space<vmem>>, vector<8x8xbf16>
    %cst = arith.constant dense<0.000000e+00> : vector<8x128xf32>
    %5 = tpu.matmul %4, %1, %cst {dimension_numbers = #tpu.dot_dimension_numbers<[1], [0], [0], [1], [0, 0, 1, 1], [], []>} : vector<8x8xbf16>, vector<8x128xbf16>, vector<8x128xf32> -> vector<8x128xf32>
    %6 = vector.extract_strided_slice %3 {offsets = [0, 0], sizes = [1, 8], strides = [1, 1]} : vector<4x8xf32> to vector<1x8xf32>
    %7 = tpu.transpose %6, [1, 0] : vector<1x8xf32> -> vector<8x1xf32>
    %8 = vector.extract_strided_slice %3 {offsets = [1, 0], sizes = [1, 8], strides = [1, 1]} : vector<4x8xf32> to vector<1x8xf32>
    %9 = tpu.transpose %8, [1, 0] : vector<1x8xf32> -> vector<8x1xf32>
    %10 = vector.broadcast %7 : vector<8x1xf32> to vector<8x128xf32>
    %11 = arith.mulf %5, %10 : vector<8x128xf32>
    %12 = vector.broadcast %9 : vector<8x1xf32> to vector<8x128xf32>
    %13 = arith.addf %11, %12 : vector<8x128xf32>
    %cst_7 = arith.constant 0.000000e+00 : f32
    %14 = vector.broadcast %cst_7 : f32 to vector<8x128xf32>
    %15 = arith.maximumf %13, %14 : vector<8x128xf32>
    %16 = arith.truncf %15 : vector<8x128xf32> to vector<8x128xbf16>
    %c0_8 = arith.constant 0 : index
    %c0_9 = arith.constant 0 : index
    %17 = vector.load %arg6[%c0_8, %c0_9] : memref<8x8xbf16, #tpu.memory_space<vmem>>, vector<8x8xbf16>
    %cst_10 = arith.constant dense<0.000000e+00> : vector<8x128xf32>
    %18 = tpu.matmul %17, %16, %cst_10 {dimension_numbers = #tpu.dot_dimension_numbers<[1], [0], [0], [1], [0, 0, 1, 1], [], []>} : vector<8x8xbf16>, vector<8x128xbf16>, vector<8x128xf32> -> vector<8x128xf32>
    %19 = vector.extract_strided_slice %3 {offsets = [2, 0], sizes = [1, 8], strides = [1, 1]} : vector<4x8xf32> to vector<1x8xf32>
    %20 = tpu.transpose %19, [1, 0] : vector<1x8xf32> -> vector<8x1xf32>
    %21 = vector.extract_strided_slice %3 {offsets = [3, 0], sizes = [1, 8], strides = [1, 1]} : vector<4x8xf32> to vector<1x8xf32>
    %22 = tpu.transpose %21, [1, 0] : vector<1x8xf32> -> vector<8x1xf32>
    %23 = vector.broadcast %20 : vector<8x1xf32> to vector<8x128xf32>
    %24 = arith.mulf %18, %23 : vector<8x128xf32>
    %25 = vector.broadcast %22 : vector<8x1xf32> to vector<8x128xf32>
    %26 = arith.addf %24, %25 : vector<8x128xf32>
    %cst_11 = arith.constant 0.000000e+00 : f32
    %27 = vector.broadcast %cst_11 : f32 to vector<8x128xf32>
    %28 = arith.maximumf %26, %27 : vector<8x128xf32>
    %29 = arith.truncf %28 : vector<8x128xf32> to vector<8x128xbf16>
    %c0_12 = arith.constant 0 : index
    %c0_13 = arith.constant 0 : index
    %c0_14 = arith.constant 0 : index
    %30 = vector.load %arg7[%c0_12, %c0_13, %c0_14] : memref<1x8x128xbf16, #tpu.memory_space<vmem>>, vector<1x8x128xbf16>
    %31 = vector.shape_cast %30 : vector<1x8x128xbf16> to vector<8x128xbf16>
    %32 = vector.shape_cast %29 : vector<8x128xbf16> to vector<1x8x128xbf16>
    tpu.vector_store %arg7[%c0_12, %c0_13, %c0_14], %32 {strides = array<i32>} : memref<1x8x128xbf16, #tpu.memory_space<vmem>>, vector<1x8x128xbf16>,
    return
  }
  func.func @transform_0(%arg0: i32, %arg1: i32, %arg2: memref<2xi32, #tpu.memory_space<smem>>) -> (i32, i32, i32) {
    %c0_i32 = arith.constant 0 : i32
    %c0_i32_0 = arith.constant 0 : i32
    return %arg0, %c0_i32, %arg1 : i32, i32, i32
  }
  func.func @transform_1(%arg0: i32, %arg1: i32, %arg2: memref<2xi32, #tpu.memory_space<smem>>) -> (i32, i32, i32) {
    %0 = arith.index_cast %arg0 : i32 to index
    %1 = memref.load %arg2[%0] : memref<2xi32, #tpu.memory_space<smem>>
    %c0_i32 = arith.constant 0 : i32
    %c0_i32_0 = arith.constant 0 : i32
    %c0_i32_1 = arith.constant 0 : i32
    return %1, %c0_i32, %c0_i32_0 : i32, i32, i32
  }
  func.func @transform_2(%arg0: i32, %arg1: i32, %arg2: memref<2xi32, #tpu.memory_space<smem>>) -> (i32, i32) {
    %c0_i32 = arith.constant 0 : i32
    %c0_i32_0 = arith.constant 0 : i32
    %c0_i32_1 = arith.constant 0 : i32
    return %c0_i32, %c0_i32_0 : i32, i32
  }
  func.func @transform_3(%arg0: i32, %arg1: i32, %arg2: memref<2xi32, #tpu.memory_space<smem>>) -> (i32, i32) {
    %c0_i32 = arith.constant 0 : i32
    %c0_i32_0 = arith.constant 0 : i32
    %c0_i32_1 = arith.constant 0 : i32
    return %c0_i32, %c0_i32_0 : i32, i32
  }
  func.func @transform_4(%arg0: i32, %arg1: i32, %arg2: memref<2xi32, #tpu.memory_space<smem>>) -> (i32, i32, i32) {
    %c0_i32 = arith.constant 0 : i32
    %c0_i32_0 = arith.constant 0 : i32
    return %arg0, %c0_i32, %arg1 : i32, i32, i32
  }
}

</mosaic_0001>

<llo_original>
// kernel: tpu_custom_call.1
$region0: #{tpu_custom_call.1}
  #allocation0 [shape = 'u32[]', space=smem, size = 0x4, offset = 0x4, fixed_abs, tag = 'smem constant byte address 0x4 - core index']
  #allocation1 [shape = 'u32[144,128]{1,0:T(1,128)}', space=vmem, size = 0x12000, scoped, tag = 'internal scratch']
  #allocation2 [shape = 's32[1]{0}', space=sflag, size = 0x4, scoped, tag = 'scoped memory for tpu_custom_call.1']
  #allocation3 [shape = 'u8[512]{0}', space=smem, size = 0x200, scoped, tag = 'prefetched SMEM operand 0']
  %s0 = inlined_call_operand.hbm [shape: s32[2], index: 0, kind: input, shape index: {}]
  %s1 = inlined_call_operand.hbm [shape: bf16[2,8,256], index: 1, kind: input, shape index: {}]
  %s2 = inlined_call_operand.hbm [shape: f32[3,4,8], index: 2, kind: input, shape index: {}]
  %s3 = inlined_call_operand.vmem [shape: bf16[8,8], index: 3, kind: input, shape index: {}]
  %s4 = inlined_call_operand.vmem [shape: bf16[8,8], index: 4, kind: input, shape index: {}]
  %s5 = inlined_call_operand.hbm [shape: bf16[2,8,256], index: 5, kind: output, shape index: {}]
  %s6 = sld [smem:[#allocation0]]
  $region57: #{tpu_custom_call.1} parent=0
    _
  %s8 = ssub.s32 1, %s6
  %s9 = scalar_select 0, %s8, %s6
  %11 = dma.hbm_to_smem %s0, 16, [#allocation3], [#allocation2]
  %12 = dma.done [#allocation2], 16
  %13 = sfence
  $region1: #{tpu_custom_call.1} parent=0
    #allocation4 [shape = 'u8[4096]{0}', space=vmem, size = 0x1000, scoped, tag = 'input window, operand 1']
    #allocation5 [shape = 's32[2]{0}', space=sflag, size = 0x8, scoped, tag = 'scoped memory for tpu_custom_call.1']
    #allocation6 [shape = 's32[2]{0}', space=sflag, size = 0x8, scoped, tag = 'scoped memory for tpu_custom_call.1']
    #allocation7 [shape = 'u8[4096]{0}', space=vmem, size = 0x1000, scoped, tag = 'input window, operand 2']
    #allocation8 [shape = 's32[2]{0}', space=sflag, size = 0x8, scoped, tag = 'scoped memory for tpu_custom_call.1']
    #allocation9 [shape = 'u8[4096]{0}', space=vmem, size = 0x1000, scoped, tag = 'output window, operand 0']
    %14 = vsyncpa [#allocation5], 0
    %s15 = scalar_lea.sflag [#allocation5], 1
    %16 = vsyncpa %s15, 0
    %17 = vsyncpa [#allocation8], 0
    %s18 = scalar_lea.sflag [#allocation8], 1
    %19 = vsyncpa %s18, 0
    %20 = vsyncpa [#allocation6], 0
    %s21 = scalar_lea.sflag [#allocation6], 1
    %22 = vsyncpa %s21, 0
    loop: start=0, step=1, limit=6
    $region2: #{tpu_custom_call.1} parent=1 // loop_pre_header
      _
    $region3: #{tpu_custom_call.1} parent=1 // loop_header
      %s24 = sphi 0, %s28
      %p25 = scmp.ge.s32.totalorder %s24, 6
      %s31 = sphi 0, %s43
      %s32 = sphi 0, %s39
      %s33 = sphi 0, %s31
      %s34 = sphi 0, %s32
      %s35 = sphi 0, %s33
      %s36 = sphi 0, %s34
      %s48 = sphi 0, %s50
      %s51 = sphi 0, %s48
      %s52 = sphi 0, %s51
      %s68 = sphi 0, %s52
      %s76 = sphi 0, %s78
      %s79 = sphi 0, %s76
      %s80 = sphi 0, %s79
      %s96 = sphi 0, %s80
      %s100 = sphi 0, %s100
      %s102 = sphi 0, %s100
      %s103 = sphi 0, %s102
      %s117 = sphi 0, %s103
      %s121 = sphi 0, %s121
      %s123 = sphi 0, %s121
      %s124 = sphi 0, %s123
      %s138 = sphi 0, %s124
      %s146 = sphi 0, %s148
      %s149 = sphi 0, %s146
      %s150 = sphi 0, %s149
      %s166 = sphi 0, %s150
    $region4: #{tpu_custom_call.1} parent=1 // loop_header_branch
      %27 = sbr.rel (%p25) target = $region8
    $region5: #{tpu_custom_call.1} parent=1 // loop_body
      %s29 = ssub.s32 %s24, 1
      %s30 = ssub.s32 %s24, 2
      %s37 = sadd.s32 1, %s32
      %p38 = scmp.ge.s32.totalorder %s37, 2
      %s39 = scalar_select %p38, 0, %s37
      %s40 = sadd.s32 1, %s31
      %s41 = scalar_select %p38, %s40, %s31
      %p42 = scmp.ge.s32.totalorder %s41, 2
      %s43 = scalar_select %p42, 0, %s41
      %s44 = ssub.s32 %s31, %s43
      %s45 = ssub.s32 %s32, %s39
      %s46 = sor.u32 %s44, %s45
      %p47 = scmp.eq.s32.totalorder %s46, 0
      %s49 = sadd.s32 %s48, 1
      %s50 = scalar_select %p47, %s48, %s49
      %p53 = pneg %p47
      %p54 = scmp.eq.s32.totalorder %s24, 3
      %p55 = por %p53, %p54
      %p56 = scmp.ne.s32.totalorder %s48, %s51
      %p57 = scmp.eq.s32.totalorder %s24, 0
      %p58 = por %p56, %p57
      %p59 = scmp.ne.s32.totalorder %s48, %s51
      %p60 = scmp.eq.s32.totalorder %s29, 3
      %p61 = por %p59, %p60
      %p62 = scmp.ne.s32.totalorder %s51, %s52
      %p63 = scmp.eq.s32.totalorder %s29, 0
      %p64 = por %p62, %p63
      %p65 = scmp.ne.s32.totalorder %s51, %s52
      %p66 = scmp.eq.s32.totalorder %s30, 3
      %p67 = por %p65, %p66
      %p69 = scmp.ne.s32.totalorder %s52, %s68
      %p70 = scmp.eq.s32.totalorder %s30, 0
      %p71 = por %p69, %p70
      %s72 = sld [smem:[#allocation3 + %s31]]
      %s73 = sld [smem:[#allocation3 + %s43]]
      %s74 = ssub.s32 %s72, %s73
      %p75 = scmp.eq.s32.totalorder %s74, 0
      %s77 = sadd.s32 %s76, 1
      %s78 = scalar_select %p75, %s76, %s77
      %p81 = pneg %p75
      %p82 = scmp.eq.s32.totalorder %s24, 3
      %p83 = por %p81, %p82
      %p84 = scmp.ne.s32.totalorder %s76, %s79
      %p85 = scmp.eq.s32.totalorder %s24, 0
      %p86 = por %p84, %p85
      %p87 = scmp.ne.s32.totalorder %s76, %s79
      %p88 = scmp.eq.s32.totalorder %s29, 3
      %p89 = por %p87, %p88
      %p90 = scmp.ne.s32.totalorder %s79, %s80
      %p91 = scmp.eq.s32.totalorder %s29, 0
      %p92 = por %p90, %p91
      %p93 = scmp.ne.s32.totalorder %s79, %s80
      %p94 = scmp.eq.s32.totalorder %s30, 3
      %p95 = por %p93, %p94
      %p97 = scmp.ne.s32.totalorder %s80, %s96
      %p98 = scmp.eq.s32.totalorder %s30, 0
      %p99 = por %p97, %p98
      %s101 = sadd.s32 %s100, 1
      %p104 = scmp.eq.s32.totalorder %s24, 3
      %p105 = scmp.ne.s32.totalorder %s100, %s102
      %p106 = scmp.eq.s32.totalorder %s24, 0
      %p107 = por %p105, %p106
      %p108 = scmp.ne.s32.totalorder %s100, %s102
      %p109 = scmp.eq.s32.totalorder %s29, 3
      %p110 = por %p108, %p109
      %p111 = scmp.ne.s32.totalorder %s102, %s103
      %p112 = scmp.eq.s32.totalorder %s29, 0
      %p113 = por %p111, %p112
      %p114 = scmp.ne.s32.totalorder %s102, %s103
      %p115 = scmp.eq.s32.totalorder %s30, 3
      %p116 = por %p114, %p115
      %p118 = scmp.ne.s32.totalorder %s103, %s117
      %p119 = scmp.eq.s32.totalorder %s30, 0
      %p120 = por %p118, %p119
      %s122 = sadd.s32 %s121, 1
      %p125 = scmp.eq.s32.totalorder %s24, 3
      %p126 = scmp.ne.s32.totalorder %s121, %s123
      %p127 = scmp.eq.s32.totalorder %s24, 0
      %p128 = por %p126, %p127
      %p129 = scmp.ne.s32.totalorder %s121, %s123
      %p130 = scmp.eq.s32.totalorder %s29, 3
      %p131 = por %p129, %p130
      %p132 = scmp.ne.s32.totalorder %s123, %s124
      %p133 = scmp.eq.s32.totalorder %s29, 0
      %p134 = por %p132, %p133
      %p135 = scmp.ne.s32.totalorder %s123, %s124
      %p136 = scmp.eq.s32.totalorder %s30, 3
      %p137 = por %p135, %p136
      %p139 = scmp.ne.s32.totalorder %s124, %s138
      %p140 = scmp.eq.s32.totalorder %s30, 0
      %p141 = por %p139, %p140
      %s142 = ssub.s32 %s31, %s43
      %s143 = ssub.s32 %s32, %s39
      %s144 = sor.u32 %s142, %s143
      %p145 = scmp.eq.s32.totalorder %s144, 0
      %s147 = sadd.s32 %s146, 1
      %s148 = scalar_select %p145, %s146, %s147
      %p151 = pneg %p145
      %p152 = scmp.eq.s32.totalorder %s24, 3
      %p153 = por %p151, %p152
      %p154 = scmp.ne.s32.totalorder %s146, %s149
      %p155 = scmp.eq.s32.totalorder %s24, 0
      %p156 = por %p154, %p155
      %p157 = scmp.ne.s32.totalorder %s146, %s149
      %p158 = scmp.eq.s32.totalorder %s29, 3
      %p159 = por %p157, %p158
      %p160 = scmp.ne.s32.totalorder %s149, %s150
      %p161 = scmp.eq.s32.totalorder %s29, 0
      %p162 = por %p160, %p161
      %p163 = scmp.ne.s32.totalorder %s149, %s150
      %p164 = scmp.eq.s32.totalorder %s30, 3
      %p165 = por %p163, %p164
      %p167 = scmp.ne.s32.totalorder %s150, %s166
      %p168 = scmp.eq.s32.totalorder %s30, 0
      %p169 = por %p167, %p168
      %p170 = scmp.le.s32.totalorder 1, %s24
      %p171 = scmp.lt.s32.totalorder %s24, 5
      %p172 = pnand %p170, %p171
      %p173 = pneg %p172
      // Predicated region
      $region9: #{tpu_custom_call.1} parent=5 // pred_check
        _
      $region10: #{tpu_custom_call.1} parent=5 // pred_check_branch
        %175 = sbr.rel (%p172) target = $region12
      $region11: #{tpu_custom_call.1} parent=5 // pred_region
        %s176 = ssub.s32 %s24, 1
        // Predicated region
        $region13: #{tpu_custom_call.1} parent=11 // pred_check
          %p177 = pneg %p113
        $region14: #{tpu_custom_call.1} parent=11 // pred_check_branch
          %179 = sbr.rel (%p177) target = $region16
        $region15: #{tpu_custom_call.1} parent=11 // pred_region
          _
        $region16: #{tpu_custom_call.1} parent=11 // pred_fallthru
          _
        // Predicated region
        $region17: #{tpu_custom_call.1} parent=11 // pred_check
          %p180 = pneg %p134
        $region18: #{tpu_custom_call.1} parent=11 // pred_check_branch
          %182 = sbr.rel (%p180) target = $region20
        $region19: #{tpu_custom_call.1} parent=11 // pred_region
          _
        $region20: #{tpu_custom_call.1} parent=11 // pred_fallthru
          _
      $region12: #{tpu_custom_call.1} parent=5 // pred_fallthru
        _
      %p183 = scmp.lt.s32.totalorder %s24, 4
      // Predicated region
      $region21: #{tpu_custom_call.1} parent=5 // pred_check
        %p184 = pneg %p183
      $region22: #{tpu_custom_call.1} parent=5 // pred_check_branch
        %186 = sbr.rel (%p184) target = $region24
      $region23: #{tpu_custom_call.1} parent=5 // pred_region
        // Predicated region
        $region25: #{tpu_custom_call.1} parent=23 // pred_check
          %p187 = pneg %p58
        $region26: #{tpu_custom_call.1} parent=23 // pred_check_branch
          %189 = sbr.rel (%p187) target = $region28
        $region27: #{tpu_custom_call.1} parent=23 // pred_region
          %s190 = sand.u32 %s48, 1
          %s191 = scalar_lea.sflag [#allocation5], %s190
          %s192 = sand.u32 %s48, 1
          %s193 = smul.addr %s192, 4
          %s194 = scalar_lea.vmem [#allocation4], %s193
          %s196 = ssub.s32 64, 64
          %197 = vsyncadd %s191, %s196
          %s198 = smul.addr %s31, 2
          %s199 = sadd.s32 %s32, %s198
          %s200 = smul.addr %s199, 64
          %s201 = scalar_lea.hbm %s1, %s200
          %s203 = sshll.u32 %s194, 4
          %s204 = int_to_ptr.vmem [resolvable:$true] %s203
          %206 = dma.hbm_to_vmem [thread:$0]  %s201, 64, %s204, %s191
        $region28: #{tpu_custom_call.1} parent=23 // pred_fallthru
          _
        // Predicated region
        $region29: #{tpu_custom_call.1} parent=23 // pred_check
          %p207 = pneg %p86
        $region30: #{tpu_custom_call.1} parent=23 // pred_check_branch
          %209 = sbr.rel (%p207) target = $region32
        $region31: #{tpu_custom_call.1} parent=23 // pred_region
          %s210 = sand.u32 %s76, 1
          %s211 = scalar_lea.sflag [#allocation8], %s210
          %s212 = sand.u32 %s76, 1
          %s213 = smul.addr %s212, 4
          %s214 = scalar_lea.vmem [#allocation7], %s213
          %s215 = sld [smem:[#allocation3 + %s31]]
          %s217 = ssub.s32 64, 64
          %218 = vsyncadd %s211, %s217
          %s219 = smul.addr %s215, 64
          %s220 = scalar_lea.hbm %s2, %s219
          %s222 = sshll.u32 %s214, 4
          %s223 = int_to_ptr.vmem [resolvable:$true] %s222
          %225 = dma.hbm_to_vmem [thread:$0]  %s220, 64, %s223, %s211
        $region32: #{tpu_custom_call.1} parent=23 // pred_fallthru
          _
      $region24: #{tpu_custom_call.1} parent=5 // pred_fallthru
        _
      %p226 = scmp.le.s32.totalorder 1, %s24
      %p227 = scmp.lt.s32.totalorder %s24, 5
      %p228 = pnand %p226, %p227
      %p229 = pneg %p228
      // Predicated region
      $region33: #{tpu_custom_call.1} parent=5 // pred_check
        _
      $region34: #{tpu_custom_call.1} parent=5 // pred_check_branch
        %231 = sbr.rel (%p228) target = $region36
      $region35: #{tpu_custom_call.1} parent=5 // pred_region
        %s232 = ssub.s32 %s24, 1
        %s233 = sand.u32 %s51, 1
        %s234 = scalar_lea.sflag [#allocation5], %s233
        %s235 = sand.u32 %s51, 1
        %s236 = smul.addr %s235, 4
        %s237 = scalar_lea.vmem [#allocation4], %s236
        // Predicated region
        $region37: #{tpu_custom_call.1} parent=35 // pred_check
          %p238 = pneg %p64
        $region38: #{tpu_custom_call.1} parent=35 // pred_check_branch
          %240 = sbr.rel (%p238) target = $region40
        $region39: #{tpu_custom_call.1} parent=35 // pred_region
          %241 = dma.done %s234, 64
        $region40: #{tpu_custom_call.1} parent=35 // pred_fallthru
          _
        %s242 = sand.u32 %s79, 1
        %s243 = scalar_lea.sflag [#allocation8], %s242
        %s244 = sand.u32 %s79, 1
        %s245 = smul.addr %s244, 4
        %s246 = scalar_lea.vmem [#allocation7], %s245
        // Predicated region
        $region41: #{tpu_custom_call.1} parent=35 // pred_check
          %p247 = pneg %p92
        $region42: #{tpu_custom_call.1} parent=35 // pred_check_branch
          %249 = sbr.rel (%p247) target = $region44
        $region43: #{tpu_custom_call.1} parent=35 // pred_region
          %250 = dma.done %s243, 64
        $region44: #{tpu_custom_call.1} parent=35 // pred_fallthru
          _
        %s251 = sand.u32 %s51, 1
        %s252 = scalar_lea.sflag [#allocation5], %s251
        %s253 = sand.u32 %s51, 1
        %s254 = smul.addr %s253, 4
        %s255 = scalar_lea.vmem [#allocation4], %s254
        %p256 = pneg %p64
        %p257 = pneg %p61
        %s258 = sand.u32 %s79, 1
        %s259 = scalar_lea.sflag [#allocation8], %s258
        %s260 = sand.u32 %s79, 1
        %s261 = smul.addr %s260, 4
        %s262 = scalar_lea.vmem [#allocation7], %s261
        %p263 = pneg %p92
        %p264 = pneg %p89
        %p265 = pneg %p113
        %p266 = pneg %p110
        %p267 = pneg %p134
        %p268 = pneg %p131
        %p269 = pneg %p162
        %p270 = pneg %p159
        %s271 = sand.u32 %s149, 1
        %s272 = scalar_lea.sflag [#allocation6], %s271
        %s273 = sand.u32 %s149, 1
        %s274 = smul.addr %s273, 4
        %s275 = scalar_lea.vmem [#allocation9], %s274
        %s276 = sld [smem:[#allocation3 + %s33]]
        %v278 = vld [vmem:[%s237] sm:$0xf]
        %v279 = vld [vmem:[%s246] sm:$0xf]
        %v280 = vld [vmem:[%s3] sm:$0xf]
        %vm281 = vcmask 64512
        %v283 = vsel %vm281, %v280, 0
        %vm285 = vcmask 1043456
        %v287 = vsel %vm285, %v278, 0
        %289 = vmatprep.subr.bf16.mxu0 0
        %290 = vmatpush1.bf16.msra.mxu0 %v287
        %291 = vmatprep.subr.bf16.mxu0 0
        %292 = vmatpush1.bf16.msra.mxu0 0
        %293 = vmatprep.subr.bf16.mxu0 0
        %294 = vmatpush1.bf16.msra.mxu0 0
        %295 = vmatprep.subr.bf16.mxu0 0
        %296 = vmatpush1.bf16.msra.mxu0 0
        %297 = vmatprep.subr.bf16.mxu0 0
        %298 = vmatpush1.bf16.msra.mxu0 0
        %299 = vmatprep.subr.bf16.mxu0 0
        %300 = vmatpush1.bf16.msra.mxu0 0
        %301 = vmatprep.subr.bf16.mxu0 0
        %302 = vmatpush1.bf16.msra.mxu0 0
        %303 = vmatprep.subr.bf16.mxu0 0
        %304 = vmatpush1.bf16.msra.mxu0 0
        %305 = vmatprep.subr.bf16.mxu0 0
        %306 = vmatpush1.bf16.msra.mxu0 0
        %307 = vmatprep.subr.bf16.mxu0 0
        %308 = vmatpush1.bf16.msra.mxu0 0
        %309 = vmatprep.subr.bf16.mxu0 0
        %310 = vmatpush1.bf16.msra.mxu0 0
        %311 = vmatprep.subr.bf16.mxu0 0
        %312 = vmatpush1.bf16.msra.mxu0 0
        %313 = vmatprep.subr.bf16.mxu0 0
        %314 = vmatpush1.bf16.msra.mxu0 0
        %315 = vmatprep.subr.bf16.mxu0 0
        %316 = vmatpush1.bf16.msra.mxu0 0
        %317 = vmatprep.subr.bf16.mxu0 0
        %318 = vmatpush1.bf16.msra.mxu0 0
        %319 = vmatprep.subr.bf16.mxu0 0
        %320 = vmatpush1.bf16.msra.mxu0 0
        %321 = vmatprep.mubr.bf16.mxu0 0
        %322 = vmatmul.mubr.bf16.gmra.mrb[0].mxu0 %v283
        %v323 = vpop.f32.mrb[0].mxu0
        %v324 = vadd.f32 0.0, %v323
        %v325 = vpop.f32.mrb[0].mxu0
        %v326 = vpop.f32.mrb[0].mxu0
        %v327 = vpop.f32.mrb[0].mxu0
        %328 = vdwg.mxu0
        %329 = vxpose.xlu0.b32.start [1/16] %v279, 128
        %330 = vxpose.xlu0.b32.cont [2/16] 0.0, 128
        %331 = vxpose.xlu0.b32.cont [3/16] 0.0, 128
        %332 = vxpose.xlu0.b32.cont [4/16] 0.0, 128
        %333 = vxpose.xlu0.b32.cont [5/16] 0.0, 128
        %334 = vxpose.xlu0.b32.cont [6/16] 0.0, 128
        %335 = vxpose.xlu0.b32.cont [7/16] 0.0, 128
        %336 = vxpose.xlu0.b32.cont [8/16] 0.0, 128
        %337 = vxpose.xlu0.b32.cont [9/16] 0.0, 128
        %338 = vxpose.xlu0.b32.cont [10/16] 0.0, 128
        %339 = vxpose.xlu0.b32.cont [11/16] 0.0, 128
        %340 = vxpose.xlu0.b32.cont [12/16] 0.0, 128
        %341 = vxpose.xlu0.b32.cont [13/16] 0.0, 128
        %342 = vxpose.xlu0.b32.cont [14/16] 0.0, 128
        %343 = vxpose.xlu0.b32.cont [15/16] 0.0, 128
        %344 = vxpose.xlu0.b32.end [16/16] 0.0, 128
        %v345 = vpop.trf.xlu0
        %v346 = vpop.trf.xlu0
        %v347 = vpop.trf.xlu0
        %v348 = vpop.trf.xlu0
        %v349 = vpop.trf.xlu0
        %v350 = vpop.trf.xlu0
        %v351 = vpop.trf.xlu0
        %v352 = vpop.trf.xlu0
        %v353 = vpop.trf.xlu0
        %v354 = vpop.trf.xlu0
        %v355 = vpop.trf.xlu0
        %v356 = vpop.trf.xlu0
        %v357 = vpop.trf.xlu0
        %v358 = vpop.trf.xlu0
        %v359 = vpop.trf.xlu0
        %v360 = vpop.trf.xlu0
        %v362 = vrot.slane %v279, 1
        %364 = vxpose.xlu0.b32.start [1/16] %v362, 128
        %365 = vxpose.xlu0.b32.cont [2/16] 0.0, 128
        %366 = vxpose.xlu0.b32.cont [3/16] 0.0, 128
        %367 = vxpose.xlu0.b32.cont [4/16] 0.0, 128
        %368 = vxpose.xlu0.b32.cont [5/16] 0.0, 128
        %369 = vxpose.xlu0.b32.cont [6/16] 0.0, 128
        %370 = vxpose.xlu0.b32.cont [7/16] 0.0, 128
        %371 = vxpose.xlu0.b32.cont [8/16] 0.0, 128
        %372 = vxpose.xlu0.b32.cont [9/16] 0.0, 128
        %373 = vxpose.xlu0.b32.cont [10/16] 0.0, 128
        %374 = vxpose.xlu0.b32.cont [11/16] 0.0, 128
        %375 = vxpose.xlu0.b32.cont [12/16] 0.0, 128
        %376 = vxpose.xlu0.b32.cont [13/16] 0.0, 128
        %377 = vxpose.xlu0.b32.cont [14/16] 0.0, 128
        %378 = vxpose.xlu0.b32.cont [15/16] 0.0, 128
        %379 = vxpose.xlu0.b32.end [16/16] 0.0, 128
        %v380 = vpop.trf.xlu0
        %v381 = vpop.trf.xlu0
        %v382 = vpop.trf.xlu0
        %v383 = vpop.trf.xlu0
        %v384 = vpop.trf.xlu0
        %v385 = vpop.trf.xlu0
        %v386 = vpop.trf.xlu0
        %v387 = vpop.trf.xlu0
        %v388 = vpop.trf.xlu0
        %v389 = vpop.trf.xlu0
        %v390 = vpop.trf.xlu0
        %v391 = vpop.trf.xlu0
        %v392 = vpop.trf.xlu0
        %v393 = vpop.trf.xlu0
        %v394 = vpop.trf.xlu0
        %v395 = vpop.trf.xlu0
        %397 = vset.pattern.permute.xlu0 0
        %398 = vperm.xlu0 %397, %v345
        %v399 = vpop.permute.xlu0 %398
        %v401 = vmul.f32 %v324, %v399
        %403 = vset.pattern.permute.xlu0 0
        %404 = vperm.xlu0 %403, %v380
        %v405 = vpop.permute.xlu0 %404
        %v407 = vadd.f32 %v401, %v405
        %v408 = vmax.f32 %v407, 0.0
        %v409 = vpack.c.bf16 %v408, %v408
        %v410 = vld [vmem:[%s4] sm:$0xf]
        %v412 = vsel %vm281, %v410, 0
        %v415 = vsel %vm285, %v409, 0
        %417 = vmatprep.subr.bf16.mxu0 0
        %418 = vmatpush1.bf16.msra.mxu0 %v415
        %419 = vmatprep.subr.bf16.mxu0 0
        %420 = vmatpush1.bf16.msra.mxu0 0
        %421 = vmatprep.subr.bf16.mxu0 0
        %422 = vmatpush1.bf16.msra.mxu0 0
        %423 = vmatprep.subr.bf16.mxu0 0
        %424 = vmatpush1.bf16.msra.mxu0 0
        %425 = vmatprep.subr.bf16.mxu0 0
        %426 = vmatpush1.bf16.msra.mxu0 0
        %427 = vmatprep.subr.bf16.mxu0 0
        %428 = vmatpush1.bf16.msra.mxu0 0
        %429 = vmatprep.subr.bf16.mxu0 0
        %430 = vmatpush1.bf16.msra.mxu0 0
        %431 = vmatprep.subr.bf16.mxu0 0
        %432 = vmatpush1.bf16.msra.mxu0 0
        %433 = vmatprep.subr.bf16.mxu0 0
        %434 = vmatpush1.bf16.msra.mxu0 0
        %435 = vmatprep.subr.bf16.mxu0 0
        %436 = vmatpush1.bf16.msra.mxu0 0
        %437 = vmatprep.subr.bf16.mxu0 0
        %438 = vmatpush1.bf16.msra.mxu0 0
        %439 = vmatprep.subr.bf16.mxu0 0
        %440 = vmatpush1.bf16.msra.mxu0 0
        %441 = vmatprep.subr.bf16.mxu0 0
        %442 = vmatpush1.bf16.msra.mxu0 0
        %443 = vmatprep.subr.bf16.mxu0 0
        %444 = vmatpush1.bf16.msra.mxu0 0
        %445 = vmatprep.subr.bf16.mxu0 0
        %446 = vmatpush1.bf16.msra.mxu0 0
        %447 = vmatprep.subr.bf16.mxu0 0
        %448 = vmatpush1.bf16.msra.mxu0 0
        %449 = vmatprep.mubr.bf16.mxu0 0
        %450 = vmatmul.mubr.bf16.gmra.mrb[0].mxu0 %v412
        %v451 = vpop.f32.mrb[0].mxu0
        %v452 = vadd.f32 0.0, %v451
        %v453 = vpop.f32.mrb[0].mxu0
        %v454 = vpop.f32.mrb[0].mxu0
        %v455 = vpop.f32.mrb[0].mxu0
        %456 = vdwg.mxu0
        %v457 = vrot.slane %v279, 2
        %459 = vxpose.xlu0.b32.start [1/16] %v457, 128
        %460 = vxpose.xlu0.b32.cont [2/16] 0.0, 128
        %461 = vxpose.xlu0.b32.cont [3/16] 0.0, 128
        %462 = vxpose.xlu0.b32.cont [4/16] 0.0, 128
        %463 = vxpose.xlu0.b32.cont [5/16] 0.0, 128
        %464 = vxpose.xlu0.b32.cont [6/16] 0.0, 128
        %465 = vxpose.xlu0.b32.cont [7/16] 0.0, 128
        %466 = vxpose.xlu0.b32.cont [8/16] 0.0, 128
        %467 = vxpose.xlu0.b32.cont [9/16] 0.0, 128
        %468 = vxpose.xlu0.b32.cont [10/16] 0.0, 128
        %469 = vxpose.xlu0.b32.cont [11/16] 0.0, 128
        %470 = vxpose.xlu0.b32.cont [12/16] 0.0, 128
        %471 = vxpose.xlu0.b32.cont [13/16] 0.0, 128
        %472 = vxpose.xlu0.b32.cont [14/16] 0.0, 128
        %473 = vxpose.xlu0.b32.cont [15/16] 0.0, 128
        %474 = vxpose.xlu0.b32.end [16/16] 0.0, 128
        %v475 = vpop.trf.xlu0
        %v476 = vpop.trf.xlu0
        %v477 = vpop.trf.xlu0
        %v478 = vpop.trf.xlu0
        %v479 = vpop.trf.xlu0
        %v480 = vpop.trf.xlu0
        %v481 = vpop.trf.xlu0
        %v482 = vpop.trf.xlu0
        %v483 = vpop.trf.xlu0
        %v484 = vpop.trf.xlu0
        %v485 = vpop.trf.xlu0
        %v486 = vpop.trf.xlu0
        %v487 = vpop.trf.xlu0
        %v488 = vpop.trf.xlu0
        %v489 = vpop.trf.xlu0
        %v490 = vpop.trf.xlu0
        %v491 = vrot.slane %v279, 3
        %493 = vxpose.xlu0.b32.start [1/16] %v491, 128
        %494 = vxpose.xlu0.b32.cont [2/16] 0.0, 128
        %495 = vxpose.xlu0.b32.cont [3/16] 0.0, 128
        %496 = vxpose.xlu0.b32.cont [4/16] 0.0, 128
        %497 = vxpose.xlu0.b32.cont [5/16] 0.0, 128
        %498 = vxpose.xlu0.b32.cont [6/16] 0.0, 128
        %499 = vxpose.xlu0.b32.cont [7/16] 0.0, 128
        %500 = vxpose.xlu0.b32.cont [8/16] 0.0, 128
        %501 = vxpose.xlu0.b32.cont [9/16] 0.0, 128
        %502 = vxpose.xlu0.b32.cont [10/16] 0.0, 128
        %503 = vxpose.xlu0.b32.cont [11/16] 0.0, 128
        %504 = vxpose.xlu0.b32.cont [12/16] 0.0, 128
        %505 = vxpose.xlu0.b32.cont [13/16] 0.0, 128
        %506 = vxpose.xlu0.b32.cont [14/16] 0.0, 128
        %507 = vxpose.xlu0.b32.cont [15/16] 0.0, 128
        %508 = vxpose.xlu0.b32.end [16/16] 0.0, 128
        %v509 = vpop.trf.xlu0
        %v510 = vpop.trf.xlu0
        %v511 = vpop.trf.xlu0
        %v512 = vpop.trf.xlu0
        %v513 = vpop.trf.xlu0
        %v514 = vpop.trf.xlu0
        %v515 = vpop.trf.xlu0
        %v516 = vpop.trf.xlu0
        %v517 = vpop.trf.xlu0
        %v518 = vpop.trf.xlu0
        %v519 = vpop.trf.xlu0
        %v520 = vpop.trf.xlu0
        %v521 = vpop.trf.xlu0
        %v522 = vpop.trf.xlu0
        %v523 = vpop.trf.xlu0
        %v524 = vpop.trf.xlu0
        %526 = vset.pattern.permute.xlu0 0
        %527 = vperm.xlu0 %526, %v475
        %v528 = vpop.permute.xlu0 %527
        %v530 = vmul.f32 %v452, %v528
        %532 = vset.pattern.permute.xlu0 0
        %533 = vperm.xlu0 %532, %v509
        %v534 = vpop.permute.xlu0 %533
        %v536 = vadd.f32 %v530, %v534
        %v537 = vmax.f32 %v536, 0.0
        %v538 = vpack.c.bf16 %v537, %v537
        %539 = vst [vmem:[%s275] sm:$0xf] %v538
        %s540 = sand.u32 %s149, 1
        %s541 = scalar_lea.sflag [#allocation6], %s540
        %s542 = sand.u32 %s149, 1
        %s543 = smul.addr %s542, 4
        %s544 = scalar_lea.vmem [#allocation9], %s543
        // Predicated region
        $region45: #{tpu_custom_call.1} parent=35 // pred_check
          %p545 = pneg %p159
        $region46: #{tpu_custom_call.1} parent=35 // pred_check_branch
          %547 = sbr.rel (%p545) target = $region48
        $region47: #{tpu_custom_call.1} parent=35 // pred_region
          %s549 = ssub.s32 64, 64
          %550 = vsyncadd %s541, %s549
          %s551 = smul.addr %s33, 2
          %s552 = sadd.s32 %s34, %s551
          %s553 = smul.addr %s552, 64
          %s554 = scalar_lea.hbm %s5, %s553
          %s556 = sshll.u32 %s544, 4
          %s557 = int_to_ptr.vmem [resolvable:$true] %s556
          %559 = dma.vmem_to_hbm [thread:$0]  %s557, 64, %s554, %s541
        $region48: #{tpu_custom_call.1} parent=35 // pred_fallthru
          _
      $region36: #{tpu_custom_call.1} parent=5 // pred_fallthru
        _
      %p560 = scmp.le.s32.totalorder 2, %s24
      // Predicated region
      $region49: #{tpu_custom_call.1} parent=5 // pred_check
        %p561 = pneg %p560
      $region50: #{tpu_custom_call.1} parent=5 // pred_check_branch
        %563 = sbr.rel (%p561) target = $region52
      $region51: #{tpu_custom_call.1} parent=5 // pred_region
        %s564 = ssub.s32 %s24, 2
        // Predicated region
        $region53: #{tpu_custom_call.1} parent=51 // pred_check
          %p565 = pneg %p165
        $region54: #{tpu_custom_call.1} parent=51 // pred_check_branch
          %567 = sbr.rel (%p565) target = $region56
        $region55: #{tpu_custom_call.1} parent=51 // pred_region
          %s568 = sand.u32 %s150, 1
          %s569 = scalar_lea.sflag [#allocation6], %s568
          %s570 = sand.u32 %s150, 1
          %s571 = smul.addr %s570, 4
          %s572 = scalar_lea.vmem [#allocation9], %s571
          %573 = dma.done %s569, 64
        $region56: #{tpu_custom_call.1} parent=51 // pred_fallthru
          _
      $region52: #{tpu_custom_call.1} parent=5 // pred_fallthru
        _
    $region6: #{tpu_custom_call.1} parent=1 // loop_footer
      %s28 = sadd.s32 1, %s24
    $region7: #{tpu_custom_call.1} parent=1 // loop_footer_branch
      %23 = sbr.rel target = $region3
    $region8: #{tpu_custom_call.1} parent=1 // loop_exit
      _
    %574 = vsyncpa [#allocation5], 1
    %s575 = scalar_lea.sflag [#allocation5], 1
    %576 = vsyncpa %s575, 1
    %577 = vsyncpa [#allocation8], 1
    %s578 = scalar_lea.sflag [#allocation8], 1
    %579 = vsyncpa %s578, 1
    %580 = vsyncpa [#allocation6], 1
    %s581 = scalar_lea.sflag [#allocation6], 1
    %582 = vsyncpa %s581, 1

</llo_original>
